<compile_context>
chip_gen: v5e
topology: v5e:2x2
jax: 0.10.0
libtpu: 0.0.40
codegen_flags: <defaults>
</compile_context>

<pallas_src>
import functools

import jax
import jax.numpy as jnp
from jax import lax
from jax.experimental import pallas as pl
from jax.experimental.pallas import tpu as pltpu

KH = KW = 3  # depthwise kernel size (kernel_size=3 in the module)


def _dsconv_kernel(x_ref, xtop_ref, xbot_ref, wdw_ref, b1_ref, wpw_ref, b2_ref,
                   o_ref, xbuf, *, width, c_in, c_out):
    # x_ref    (1, TH, C*W)   bf16  current row strip, lane index = c*W + w
    # xtop_ref (1, HH, C*W)   bf16  block whose LAST row is image row s*TH - 1
    # xbot_ref (1, HH, C*W)   bf16  block whose FIRST row is image row (s+1)*TH
    # wdw_ref  (9, C*W)       f32   depthwise taps (BN1 scale folded, tiled over w)
    # b1_ref   (1, C*W)       f32   folded BN1 bias
    # wpw_ref  (C, Cout*W)    f32   pointwise weights (BN2 scale folded), lane = co*W + w
    # b2_ref   (1, Cout*W)    f32   folded BN2 bias
    # o_ref    (1, TH, Cout*W) bf16 lane-dense output block
    # xbuf     VMEM (TH+2, C*W) f32 H-halo'd strip (every row rewritten each step)
    s = pl.program_id(1)
    ns = pl.num_programs(1)
    th = x_ref.shape[1]
    cw = x_ref.shape[2]
    f32 = jnp.float32

    # ---- assemble the H-halo'd strip; border rows are masked (no zero-fill,
    # no stale data: all TH+2 rows written every step).
    hh = xtop_ref.shape[1]
    top_ok = (s > 0).astype(f32)
    bot_ok = (s < ns - 1).astype(f32)
    xbuf[1:th + 1, :] = x_ref[0].astype(f32)
    xbuf[0:1, :] = xtop_ref[0, hh - 1:hh, :].astype(f32) * top_ok
    xbuf[th + 1:th + 2, :] = xbot_ref[0, 0:1, :].astype(f32) * bot_ok
    xp = xbuf[...]                                            # (TH+2, C*W)

    # ---- W halo: +-1 lane shift inside each channel's W-wide lane block.
    # Lanes that cross a channel-block boundary are exactly the zero-padded
    # image columns -> mask them.
    wpos = lax.broadcasted_iota(jnp.int32, xp.shape, 1) % width
    zlane = jnp.zeros((th + 2, 1), f32)
    x_m1 = jnp.concatenate([zlane, xp[:, :-1]], axis=1)       # value at column w-1
    x_m1 = jnp.where(wpos == 0, 0.0, x_m1)
    x_p1 = jnp.concatenate([xp[:, 1:], zlane], axis=1)        # value at column w+1
    x_p1 = jnp.where(wpos == width - 1, 0.0, x_p1)
    taps_x = (x_m1, xp, x_p1)                                 # indexed by kw

    # ---- depthwise 3x3 (VPU, f32 accumulation) + folded BN1 bias + ReLU6
    wdw = wdw_ref[...]                                        # (9, C*W)
    acc = jnp.zeros((th, cw), f32)
    for kh in range(KH):                                      # statically unrolled taps
        for kw in range(KW):
            k = kh * KW + kw
            acc = acc + taps_x[kw][kh:kh + th, :] * wdw[k:k + 1, :]
    y = jnp.clip(acc + b1_ref[...], 0.0, 6.0)                 # (TH, C*W)

    # ---- pointwise 1x1 as a VPU broadcast-MAC over the C input channels
    # (MXU skipped: K=C, N=Cout are tiny -> almost pure fill/drain).  Output
    # lanes are co*W + w, so z is already in the lane-dense store layout.
    wpw = wpw_ref[...]                                        # (C, Cout*W)
    z = jnp.zeros((th, c_out * width), f32) + b2_ref[...]
    for c in range(c_in):
        blk = y[:, c * width:(c + 1) * width]                 # (TH, W)
        rep = jnp.concatenate([blk] * c_out, axis=1)          # (TH, Cout*W)
        z = z + rep * wpw[c:c + 1, :]
    o_ref[0] = z.astype(o_ref.dtype)


def _pick_row_tile(batch, h, cw, requested):
    """Largest multiple-of-8 divisor of H that keeps >=4 total grid steps
    (v7x: 2 TCs) and a small per-step f32 footprint."""
    if requested is not None and requested % 8 == 0 and h % requested == 0:
        return requested
    divisors = [d for d in range(8, h + 1, 8) if h % d == 0]
    if not divisors:
        return h                                   # tiny / odd H: whole image per step
    budget_rows = max(8, (4 << 20) // (cw * 4 * 8))
    fitting = [d for d in divisors if d <= budget_rows] or [min(divisors)]
    fed = [d for d in fitting if batch * (h // d) >= 4]
    return max(fed) if fed else max(fitting)


def dsconv_forward(x_nchw, params, *, row_tile=None):
    """DSConv forward. x_nchw: (N, C, H, W) float32. Returns (N, Cout, H, W)."""
    w_dw = params["w_dw"]                          # (C, 1, 3, 3)  PyTorch layout
    w_pw = params["w_pw"]                          # (Cout, C, 1, 1)
    s1, b1 = params["bn1_scale"], params["bn1_bias"]
    s2, b2 = params["bn2_scale"], params["bn2_bias"]

    n, c, h, width = x_nchw.shape
    c_out = w_pw.shape[0]
    cw, cow = c * width, c_out * width

    th = _pick_row_tile(n, h, cw, row_tile)
    n_strips = h // th
    multi = n_strips > 1
    th_halo = 8 if multi else th                   # halo rows fetched 8-row aligned

    # one-time glue: channel-major lane flattening (lane = c*W + w in, co*W + w out),
    # bf16 HBM I/O, BN scales folded into the conv weights.
    x = jnp.transpose(x_nchw, (0, 2, 1, 3)).reshape(n, h, cw).astype(jnp.bfloat16)
    wdw = jnp.repeat(
        jnp.transpose(w_dw[:, 0] * s1[:, None, None], (1, 2, 0)).reshape(KH * KW, c),
        width, axis=1).astype(jnp.float32)                              # (9, C*W)
    b1l = jnp.repeat(b1, width)[None, :].astype(jnp.float32)            # (1, C*W)
    wpw = jnp.repeat((w_pw[:, :, 0, 0] * s2[:, None]).T, width,
                     axis=1).astype(jnp.float32)                        # (C, Cout*W)
    b2l = jnp.repeat(b2, width)[None, :].astype(jnp.float32)            # (1, Cout*W)

    if multi:
        blk = th // 8
        hb = h // 8
        top_map = lambda ni, si: (ni, jnp.maximum(si * blk - 1, 0), 0)
        bot_map = lambda ni, si: (ni, jnp.minimum((si + 1) * blk, hb - 1), 0)
    else:
        top_map = lambda ni, si: (ni, 0, 0)
        bot_map = lambda ni, si: (ni, 0, 0)

    kernel = functools.partial(_dsconv_kernel, width=width, c_in=c, c_out=c_out)

    # explicit scoped-VMEM budget (tiny here; clamp keeps it legal on v5e..v7x)
    step_bytes = (2 * (th + 2 * th_halo) * cw + 2 * th * cow
                  + 4 * ((KH * KW + 1) * cw + (c + 1) * cow)
                  + 4 * (th + 2) * cw * 6)
    vmem_limit = int(min(max(4 * step_bytes, 8 << 20), 48 << 20))

    out_flat = pl.pallas_call(
        kernel,
        out_shape=jax.ShapeDtypeStruct((n, h, cow), jnp.bfloat16),
        grid=(n, n_strips),
        in_specs=[
            pl.BlockSpec((1, th, cw), lambda ni, si: (ni, si, 0)),       # row strip
            pl.BlockSpec((1, th_halo, cw), top_map),                     # halo row above
            pl.BlockSpec((1, th_halo, cw), bot_map),                     # halo row below
            pl.BlockSpec((KH * KW, cw), lambda ni, si: (0, 0)),          # dw taps (BN1 folded)
            pl.BlockSpec((1, cw), lambda ni, si: (0, 0)),                # BN1 bias
            pl.BlockSpec((c, cow), lambda ni, si: (0, 0)),               # pw weights (BN2 folded)
            pl.BlockSpec((1, cow), lambda ni, si: (0, 0)),               # BN2 bias
        ],
        out_specs=pl.BlockSpec((1, th, cow), lambda ni, si: (ni, si, 0)),
        scratch_shapes=[pltpu.VMEM((th + 2, cw), jnp.float32)],
        compiler_params=pltpu.CompilerParams(
            dimension_semantics=("parallel", "parallel"),
            vmem_limit_bytes=vmem_limit),
    )(x, x, x, wdw, b1l, wpw, b2l)

    out = out_flat.reshape(n, h, c_out, width).transpose(0, 2, 1, 3)     # NCHW
    return out.astype(x_nchw.dtype)


def dsconv_reference(x_nchw, params):
    """Pure-JAX reference (lax.conv, f32) for correctness checking."""
    c = x_nchw.shape[1]
    y = lax.conv_general_dilated(
        x_nchw, params["w_dw"], (1, 1), ((1, 1), (1, 1)),
        feature_group_count=c, dimension_numbers=("NCHW", "OIHW", "NCHW"))
    y = y * params["bn1_scale"][None, :, None, None] + params["bn1_bias"][None, :, None, None]
    y = jnp.clip(y, 0.0, 6.0)
    z = lax.conv_general_dilated(
        y, params["w_pw"], (1, 1), ((0, 0), (0, 0)),
        dimension_numbers=("NCHW", "OIHW", "NCHW"))
    z = z * params["bn2_scale"][None, :, None, None] + params["bn2_bias"][None, :, None, None]
    return z


def init_params(key, c_in, c_out, eps=1e-5):
    ks = jax.random.split(key, 10)
    w_dw = jax.random.normal(ks[0], (c_in, 1, KH, KW), jnp.float32) * 0.2
    w_pw = jax.random.normal(ks[1], (c_out, c_in, 1, 1), jnp.float32) * 0.2
    g1 = 1.0 + 0.1 * jax.random.normal(ks[2], (c_in,), jnp.float32)
    be1 = 0.1 * jax.random.normal(ks[3], (c_in,), jnp.float32)
    m1 = 0.1 * jax.random.normal(ks[4], (c_in,), jnp.float32)
    v1 = jnp.abs(jax.random.normal(ks[5], (c_in,), jnp.float32)) + 0.5
    g2 = 1.0 + 0.1 * jax.random.normal(ks[6], (c_out,), jnp.float32)
    be2 = 0.1 * jax.random.normal(ks[7], (c_out,), jnp.float32)
    m2 = 0.1 * jax.random.normal(ks[8], (c_out,), jnp.float32)
    v2 = jnp.abs(jax.random.normal(ks[9], (c_out,), jnp.float32)) + 0.5
    s1 = g1 / jnp.sqrt(v1 + eps)
    s2 = g2 / jnp.sqrt(v2 + eps)
    return {
        "w_dw": w_dw, "w_pw": w_pw,
        "bn1_scale": s1, "bn1_bias": be1 - m1 * s1,
        "bn2_scale": s2, "bn2_bias": be2 - m2 * s2,
    }


if __name__ == "__main__":
    key = jax.random.PRNGKey(0)
    k_x, k_p = jax.random.split(key)
    N, C_IN, C_OUT, H, W_IMG = 2, 4, 8, 16, 16

    x = jax.random.normal(k_x, (N, C_IN, H, W_IMG), jnp.float32)   # NCHW input
    params = init_params(k_p, C_IN, C_OUT)

    out = jax.jit(dsconv_forward)(x, params)
    out = jax.block_until_ready(out)

    ref = dsconv_reference(x, params)
    assert out.shape == (N, C_OUT, H, W_IMG)
    # bf16 HBM I/O (input + output) with f32 in-kernel math -> loose tolerance
    assert jnp.allclose(out, ref, rtol=5e-2, atol=5e-2), "mismatch vs reference"

    print("KERNEL_OK")
</pallas_src>

<mosaic_0001>
module attributes {stable_mosaic.version = 11 : i64} {
  func.func @_dsconv_kernel(%arg0: i32, %arg1: i32, %arg2: memref<1x8x64xbf16, #tpu.memory_space<vmem>>, %arg3: memref<1x8x64xbf16, #tpu.memory_space<vmem>>, %arg4: memref<1x8x64xbf16, #tpu.memory_space<vmem>>, %arg5: memref<9x64xf32, #tpu.memory_space<vmem>>, %arg6: memref<1x64xf32, #tpu.memory_space<vmem>>, %arg7: memref<4x128xf32, #tpu.memory_space<vmem>>, %arg8: memref<1x128xf32, #tpu.memory_space<vmem>>, %arg9: memref<1x8x128xbf16, #tpu.memory_space<vmem>>, %arg10: memref<10x64xf32, #tpu.memory_space<vmem>>) attributes {dimension_semantics = [#tpu.dimension_semantics<parallel>, #tpu.dimension_semantics<parallel>], iteration_bounds = array<i64: 2, 2>, scalar_prefetch = 0 : i64, scratch_operands = 1 : i64, tpu.core_type = #tpu.core_type<tc>, window_params = [{transform_indices = @transform_0, window_bounds = array<i64: 1, 8, 64>}, {transform_indices = @transform_1, window_bounds = array<i64: 1, 8, 64>}, {transform_indices = @transform_2, window_bounds = array<i64: 1, 8, 64>}, {pipeline_mode = #tpu.pipeline_mode<synchronous>, transform_indices = @transform_3, window_bounds = array<i64: 9, 64>}, {pipeline_mode = #tpu.pipeline_mode<synchronous>, transform_indices = @transform_4, window_bounds = array<i64: 1, 64>}, {pipeline_mode = #tpu.pipeline_mode<synchronous>, transform_indices = @transform_5, window_bounds = array<i64: 4, 128>}, {pipeline_mode = #tpu.pipeline_mode<synchronous>, transform_indices = @transform_6, window_bounds = array<i64: 1, 128>}, {transform_indices = @transform_7, window_bounds = array<i64: 1, 8, 128>}]} {
    %c0_i32 = arith.constant 0 : i32
    %0 = arith.cmpi sgt, %arg1, %c0_i32 : i32
    %1 = arith.extui %0 : i1 to i32
    %2 = arith.sitofp %1 : i32 to f32
    %c1_i32 = arith.constant 1 : i32
    %3 = arith.cmpi slt, %arg1, %c1_i32 : i32
    %4 = arith.extui %3 : i1 to i32
    %5 = arith.sitofp %4 : i32 to f32
    %c0 = arith.constant 0 : index
    %c0_0 = arith.constant 0 : index
    %c0_1 = arith.constant 0 : index
    %6 = vector.load %arg2[%c0, %c0_0, %c0_1] : memref<1x8x64xbf16, #tpu.memory_space<vmem>>, vector<1x8x64xbf16>
    %7 = vector.shape_cast %6 : vector<1x8x64xbf16> to vector<8x64xbf16>
    %8 = arith.extf %7 : vector<8x64xbf16> to vector<8x64xf32>
    %c1 = arith.constant 1 : index
    %c0_2 = arith.constant 0 : index
    %9 = vector.load %arg10[%c1, %c0_2] : memref<10x64xf32, #tpu.memory_space<vmem>>, vector<8x64xf32>
    tpu.vector_store %arg10[%c1, %c0_2], %8 {strides = array<i32>} : memref<10x64xf32, #tpu.memory_space<vmem>>, vector<8x64xf32>,
    %c0_3 = arith.constant 0 : index
    %c7 = arith.constant 7 : index
    %c0_4 = arith.constant 0 : index
    %10 = vector.load %arg3[%c0_3, %c7, %c0_4] : memref<1x8x64xbf16, #tpu.memory_space<vmem>>, vector<1x1x64xbf16>
    %11 = vector.shape_cast %10 : vector<1x1x64xbf16> to vector<1x64xbf16>
    %12 = arith.extf %11 : vector<1x64xbf16> to vector<1x64xf32>
    %13 = vector.broadcast %2 : f32 to vector<1x64xf32>
    %14 = arith.mulf %12, %13 : vector<1x64xf32>
    %c0_5 = arith.constant 0 : index
    %c0_6 = arith.constant 0 : index
    %15 = vector.load %arg10[%c0_5, %c0_6] : memref<10x64xf32, #tpu.memory_space<vmem>>, vector<1x64xf32>
    tpu.vector_store %arg10[%c0_5, %c0_6], %14 {strides = array<i32>} : memref<10x64xf32, #tpu.memory_space<vmem>>, vector<1x64xf32>,
    %c0_7 = arith.constant 0 : index
    %c0_8 = arith.constant 0 : index
    %c0_9 = arith.constant 0 : index
    %16 = vector.load %arg4[%c0_7, %c0_8, %c0_9] : memref<1x8x64xbf16, #tpu.memory_space<vmem>>, vector<1x1x64xbf16>
    %17 = vector.shape_cast %16 : vector<1x1x64xbf16> to vector<1x64xbf16>
    %18 = arith.extf %17 : vector<1x64xbf16> to vector<1x64xf32>
    %19 = vector.broadcast %5 : f32 to vector<1x64xf32>
    %20 = arith.mulf %18, %19 : vector<1x64xf32>
    %c9 = arith.constant 9 : index
    %c0_10 = arith.constant 0 : index
    %21 = vector.load %arg10[%c9, %c0_10] : memref<10x64xf32, #tpu.memory_space<vmem>>, vector<1x64xf32>
    tpu.vector_store %arg10[%c9, %c0_10], %20 {strides = array<i32>} : memref<10x64xf32, #tpu.memory_space<vmem>>, vector<1x64xf32>,
    %c0_11 = arith.constant 0 : index
    %c0_12 = arith.constant 0 : index
    %22 = vector.load %arg10[%c0_11, %c0_12] : memref<10x64xf32, #tpu.memory_space<vmem>>, vector<10x64xf32>
    %23 = tpu.iota {dimensions = array<i32: 1>} : vector<10x64xi32>
    %c16_i32 = arith.constant 16 : i32
    %c0_i32_13 = arith.constant 0 : i32
    %24 = arith.cmpi eq, %c16_i32, %c0_i32_13 : i32
    %c1_i32_14 = arith.constant 1 : i32
    %25 = arith.select %24, %c1_i32_14, %c16_i32 : i32
    %26 = vector.broadcast %25 : i32 to vector<10x64xi32>
    %27 = arith.remsi %23, %26 : vector<10x64xi32>
    %c0_i32_15 = arith.constant 0 : i32
    %28 = vector.broadcast %c0_i32_15 : i32 to vector<10x64xi32>
    %29 = arith.cmpi ne, %27, %28 : vector<10x64xi32>
    %c0_i32_16 = arith.constant 0 : i32
    %30 = vector.broadcast %c0_i32_16 : i32 to vector<10x64xi32>
    %31 = arith.cmpi slt, %27, %30 : vector<10x64xi32>
    %c0_i32_17 = arith.constant 0 : i32
    %32 = arith.cmpi slt, %25, %c0_i32_17 : i32
    %33 = vector.broadcast %32 : i1 to vector<10x64xi1>
    %34 = vector.broadcast %33 : vector<10x64xi1> to vector<10x64xi1>
    %35 = arith.xori %31, %34 : vector<10x64xi1>
    %36 = arith.andi %35, %29 : vector<10x64xi1>
    %37 = vector.broadcast %25 : i32 to vector<10x64xi32>
    %38 = arith.addi %27, %37 : vector<10x64xi32>
    %39 = arith.select %36, %38, %27 : vector<10x64xi1>, vector<10x64xi32>
    %cst = arith.constant 0.000000e+00 : f32
    %40 = vector.broadcast %cst : f32 to vector<10x1xf32>
    %41 = vector.extract_strided_slice %22 {offsets = [0, 0], sizes = [10, 63], strides = [1, 1]} : vector<10x64xf32> to vector<10x63xf32>
    %42 = tpu.concatenate %40, %41 in 1 : vector<10x1xf32>, vector<10x63xf32> -> vector<10x64xf32>
    %c0_i32_18 = arith.constant 0 : i32
    %43 = vector.broadcast %c0_i32_18 : i32 to vector<10x64xi32>
    %44 = arith.cmpi eq, %39, %43 : vector<10x64xi32>
    %cst_19 = arith.constant 0.000000e+00 : f32
    %45 = vector.broadcast %cst_19 : f32 to vector<10x64xf32>
    %46 = arith.select %44, %45, %42 : vector<10x64xi1>, vector<10x64xf32>
    %47 = vector.extract_strided_slice %22 {offsets = [0, 1], sizes = [10, 63], strides = [1, 1]} : vector<10x64xf32> to vector<10x63xf32>
    %48 = tpu.concatenate %47, %40 in 1 : vector<10x63xf32>, vector<10x1xf32> -> vector<10x64xf32>
    %c15_i32 = arith.constant 15 : i32
    %49 = vector.broadcast %c15_i32 : i32 to vector<10x64xi32>
    %50 = arith.cmpi eq, %39, %49 : vector<10x64xi32>
    %cst_20 = arith.constant 0.000000e+00 : f32
    %51 = vector.broadcast %cst_20 : f32 to vector<10x64xf32>
    %52 = arith.select %50, %51, %48 : vector<10x64xi1>, vector<10x64xf32>
    %c0_21 = arith.constant 0 : index
    %c0_22 = arith.constant 0 : index
    %53 = vector.load %arg5[%c0_21, %c0_22] : memref<9x64xf32, #tpu.memory_space<vmem>>, vector<9x64xf32>
    %cst_23 = arith.constant 0.000000e+00 : f32
    %54 = vector.broadcast %cst_23 : f32 to vector<8x64xf32>
    %55 = vector.extract_strided_slice %46 {offsets = [0, 0], sizes = [8, 64], strides = [1, 1]} : vector<10x64xf32> to vector<8x64xf32>
    %56 = vector.extract_strided_slice %53 {offsets = [0, 0], sizes = [1, 64], strides = [1, 1]} : vector<9x64xf32> to vector<1x64xf32>
    %57 = vector.broadcast %56 : vector<1x64xf32> to vector<8x64xf32>
    %58 = arith.mulf %55, %57 : vector<8x64xf32>
    %59 = arith.addf %54, %58 : vector<8x64xf32>
    %60 = vector.extract_strided_slice %22 {offsets = [0, 0], sizes = [8, 64], strides = [1, 1]} : vector<10x64xf32> to vector<8x64xf32>
    %61 = vector.extract_strided_slice %53 {offsets = [1, 0], sizes = [1, 64], strides = [1, 1]} : vector<9x64xf32> to vector<1x64xf32>
    %62 = vector.broadcast %61 : vector<1x64xf32> to vector<8x64xf32>
    %63 = arith.mulf %60, %62 : vector<8x64xf32>
    %64 = arith.addf %59, %63 : vector<8x64xf32>
    %65 = vector.extract_strided_slice %52 {offsets = [0, 0], sizes = [8, 64], strides = [1, 1]} : vector<10x64xf32> to vector<8x64xf32>
    %66 = vector.extract_strided_slice %53 {offsets = [2, 0], sizes = [1, 64], strides = [1, 1]} : vector<9x64xf32> to vector<1x64xf32>
    %67 = vector.broadcast %66 : vector<1x64xf32> to vector<8x64xf32>
    %68 = arith.mulf %65, %67 : vector<8x64xf32>
    %69 = arith.addf %64, %68 : vector<8x64xf32>
    %70 = vector.extract_strided_slice %46 {offsets = [1, 0], sizes = [8, 64], strides = [1, 1]} : vector<10x64xf32> to vector<8x64xf32>
    %71 = vector.extract_strided_slice %53 {offsets = [3, 0], sizes = [1, 64], strides = [1, 1]} : vector<9x64xf32> to vector<1x64xf32>
    %72 = vector.broadcast %71 : vector<1x64xf32> to vector<8x64xf32>
    %73 = arith.mulf %70, %72 : vector<8x64xf32>
    %74 = arith.addf %69, %73 : vector<8x64xf32>
    %75 = vector.extract_strided_slice %22 {offsets = [1, 0], sizes = [8, 64], strides = [1, 1]} : vector<10x64xf32> to vector<8x64xf32>
    %76 = vector.extract_strided_slice %53 {offsets = [4, 0], sizes = [1, 64], strides = [1, 1]} : vector<9x64xf32> to vector<1x64xf32>
    %77 = vector.broadcast %76 : vector<1x64xf32> to vector<8x64xf32>
    %78 = arith.mulf %75, %77 : vector<8x64xf32>
    %79 = arith.addf %74, %78 : vector<8x64xf32>
    %80 = vector.extract_strided_slice %52 {offsets = [1, 0], sizes = [8, 64], strides = [1, 1]} : vector<10x64xf32> to vector<8x64xf32>
    %81 = vector.extract_strided_slice %53 {offsets = [5, 0], sizes = [1, 64], strides = [1, 1]} : vector<9x64xf32> to vector<1x64xf32>
    %82 = vector.broadcast %81 : vector<1x64xf32> to vector<8x64xf32>
    %83 = arith.mulf %80, %82 : vector<8x64xf32>
    %84 = arith.addf %79, %83 : vector<8x64xf32>
    %85 = vector.extract_strided_slice %46 {offsets = [2, 0], sizes = [8, 64], strides = [1, 1]} : vector<10x64xf32> to vector<8x64xf32>
    %86 = vector.extract_strided_slice %53 {offsets = [6, 0], sizes = [1, 64], strides = [1, 1]} : vector<9x64xf32> to vector<1x64xf32>
    %87 = vector.broadcast %86 : vector<1x64xf32> to vector<8x64xf32>
    %88 = arith.mulf %85, %87 : vector<8x64xf32>
    %89 = arith.addf %84, %88 : vector<8x64xf32>
    %90 = vector.extract_strided_slice %22 {offsets = [2, 0], sizes = [8, 64], strides = [1, 1]} : vector<10x64xf32> to vector<8x64xf32>
    %91 = vector.extract_strided_slice %53 {offsets = [7, 0], sizes = [1, 64], strides = [1, 1]} : vector<9x64xf32> to vector<1x64xf32>
    %92 = vector.broadcast %91 : vector<1x64xf32> to vector<8x64xf32>
    %93 = arith.mulf %90, %92 : vector<8x64xf32>
    %94 = arith.addf %89, %93 : vector<8x64xf32>
    %95 = vector.extract_strided_slice %52 {offsets = [2, 0], sizes = [8, 64], strides = [1, 1]} : vector<10x64xf32> to vector<8x64xf32>
    %96 = vector.extract_strided_slice %53 {offsets = [8, 0], sizes = [1, 64], strides = [1, 1]} : vector<9x64xf32> to vector<1x64xf32>
    %97 = vector.broadcast %96 : vector<1x64xf32> to vector<8x64xf32>
    %98 = arith.mulf %95, %97 : vector<8x64xf32>
    %99 = arith.addf %94, %98 : vector<8x64xf32>
    %c0_24 = arith.constant 0 : index
    %c0_25 = arith.constant 0 : index
    %100 = vector.load %arg6[%c0_24, %c0_25] : memref<1x64xf32, #tpu.memory_space<vmem>>, vector<1x64xf32>
    %101 = vector.broadcast %100 : vector<1x64xf32> to vector<8x64xf32>
    %102 = arith.addf %99, %101 : vector<8x64xf32>
    %cst_26 = arith.constant 0.000000e+00 : f32
    %cst_27 = arith.constant 6.000000e+00 : f32
    %103 = vector.broadcast %cst_26 : f32 to vector<8x64xf32>
    %104 = arith.maximumf %103, %102 : vector<8x64xf32>
    %105 = vector.broadcast %cst_27 : f32 to vector<8x64xf32>
    %106 = arith.minimumf %105, %104 : vector<8x64xf32>
    %c0_28 = arith.constant 0 : index
    %c0_29 = arith.constant 0 : index
    %107 = vector.load %arg7[%c0_28, %c0_29] : memref<4x128xf32, #tpu.memory_space<vmem>>, vector<4x128xf32>
    %cst_30 = arith.constant 0.000000e+00 : f32
    %108 = vector.broadcast %cst_30 : f32 to vector<8x128xf32>
    %c0_31 = arith.constant 0 : index
    %c0_32 = arith.constant 0 : index
    %109 = vector.load %arg8[%c0_31, %c0_32] : memref<1x128xf32, #tpu.memory_space<vmem>>, vector<1x128xf32>
    %110 = vector.broadcast %109 : vector<1x128xf32> to vector<8x128xf32>
    %111 = arith.addf %108, %110 : vector<8x128xf32>
    %112 = vector.extract_strided_slice %106 {offsets = [0, 0], sizes = [8, 16], strides = [1, 1]} : vector<8x64xf32> to vector<8x16xf32>
    %113 = tpu.concatenate %112, %112, %112, %112, %112, %112, %112, %112 in 1 : vector<8x16xf32>, vector<8x16xf32>, vector<8x16xf32>, vector<8x16xf32>, vector<8x16xf32>, vector<8x16xf32>, vector<8x16xf32>, vector<8x16xf32> -> vector<8x128xf32>
    %114 = vector.extract_strided_slice %107 {offsets = [0, 0], sizes = [1, 128], strides = [1, 1]} : vector<4x128xf32> to vector<1x128xf32>
    %115 = vector.broadcast %114 : vector<1x128xf32> to vector<8x128xf32>
    %116 = arith.mulf %113, %115 : vector<8x128xf32>
    %117 = arith.addf %111, %116 : vector<8x128xf32>
    %118 = vector.extract_strided_slice %106 {offsets = [0, 16], sizes = [8, 16], strides = [1, 1]} : vector<8x64xf32> to vector<8x16xf32>
    %119 = tpu.concatenate %118, %118, %118, %118, %118, %118, %118, %118 in 1 : vector<8x16xf32>, vector<8x16xf32>, vector<8x16xf32>, vector<8x16xf32>, vector<8x16xf32>, vector<8x16xf32>, vector<8x16xf32>, vector<8x16xf32> -> vector<8x128xf32>
    %120 = vector.extract_strided_slice %107 {offsets = [1, 0], sizes = [1, 128], strides = [1, 1]} : vector<4x128xf32> to vector<1x128xf32>
    %121 = vector.broadcast %120 : vector<1x128xf32> to vector<8x128xf32>
    %122 = arith.mulf %119, %121 : vector<8x128xf32>
    %123 = arith.addf %117, %122 : vector<8x128xf32>
    %124 = vector.extract_strided_slice %106 {offsets = [0, 32], sizes = [8, 16], strides = [1, 1]} : vector<8x64xf32> to vector<8x16xf32>
    %125 = tpu.concatenate %124, %124, %124, %124, %124, %124, %124, %124 in 1 : vector<8x16xf32>, vector<8x16xf32>, vector<8x16xf32>, vector<8x16xf32>, vector<8x16xf32>, vector<8x16xf32>, vector<8x16xf32>, vector<8x16xf32> -> vector<8x128xf32>
    %126 = vector.extract_strided_slice %107 {offsets = [2, 0], sizes = [1, 128], strides = [1, 1]} : vector<4x128xf32> to vector<1x128xf32>
    %127 = vector.broadcast %126 : vector<1x128xf32> to vector<8x128xf32>
    %128 = arith.mulf %125, %127 : vector<8x128xf32>
    %129 = arith.addf %123, %128 : vector<8x128xf32>
    %130 = vector.extract_strided_slice %106 {offsets = [0, 48], sizes = [8, 16], strides = [1, 1]} : vector<8x64xf32> to vector<8x16xf32>
    %131 = tpu.concatenate %130, %130, %130, %130, %130, %130, %130, %130 in 1 : vector<8x16xf32>, vector<8x16xf32>, vector<8x16xf32>, vector<8x16xf32>, vector<8x16xf32>, vector<8x16xf32>, vector<8x16xf32>, vector<8x16xf32> -> vector<8x128xf32>
    %132 = vector.extract_strided_slice %107 {offsets = [3, 0], sizes = [1, 128], strides = [1, 1]} : vector<4x128xf32> to vector<1x128xf32>
    %133 = vector.broadcast %132 : vector<1x128xf32> to vector<8x128xf32>
    %134 = arith.mulf %131, %133 : vector<8x128xf32>
    %135 = arith.addf %129, %134 : vector<8x128xf32>
    %136 = arith.truncf %135 : vector<8x128xf32> to vector<8x128xbf16>
    %c0_33 = arith.constant 0 : index
    %c0_34 = arith.constant 0 : index
    %c0_35 = arith.constant 0 : index
    %137 = vector.load %arg9[%c0_33, %c0_34, %c0_35] : memref<1x8x128xbf16, #tpu.memory_space<vmem>>, vector<1x8x128xbf16>
    %138 = vector.shape_cast %137 : vector<1x8x128xbf16> to vector<8x128xbf16>
    %139 = vector.shape_cast %136 : vector<8x128xbf16> to vector<1x8x128xbf16>
    tpu.vector_store %arg9[%c0_33, %c0_34, %c0_35], %139 {strides = array<i32>} : memref<1x8x128xbf16, #tpu.memory_space<vmem>>, vector<1x8x128xbf16>,
    return
  }
  func.func @transform_0(%arg0: i32, %arg1: i32) -> (i32, i32, i32) {
    %c0_i32 = arith.constant 0 : i32
    %c0_i32_0 = arith.constant 0 : i32
    return %arg0, %arg1, %c0_i32 : i32, i32, i32
  }
  func.func @transform_1(%arg0: i32, %arg1: i32) -> (i32, i32, i32) {
    %c1_i32 = arith.constant 1 : i32
    %0 = arith.muli %arg1, %c1_i32 : i32
    %c1_i32_0 = arith.constant 1 : i32
    %1 = arith.subi %0, %c1_i32_0 : i32
    %c0_i32 = arith.constant 0 : i32
    %2 = arith.maxsi %1, %c0_i32 : i32
    %c0_i32_1 = arith.constant 0 : i32
    %c0_i32_2 = arith.constant 0 : i32
    return %arg0, %2, %c0_i32_1 : i32, i32, i32
  }
  func.func @transform_2(%arg0: i32, %arg1: i32) -> (i32, i32, i32) {
    %c1_i32 = arith.constant 1 : i32
    %0 = arith.addi %arg1, %c1_i32 : i32
    %c1_i32_0 = arith.constant 1 : i32
    %1 = arith.muli %0, %c1_i32_0 : i32
    %c1_i32_1 = arith.constant 1 : i32
    %2 = arith.minsi %1, %c1_i32_1 : i32
    %c0_i32 = arith.constant 0 : i32
    %c0_i32_2 = arith.constant 0 : i32
    return %arg0, %2, %c0_i32 : i32, i32, i32
  }
  func.func @transform_3(%arg0: i32, %arg1: i32) -> (i32, i32) {
    %c0_i32 = arith.constant 0 : i32
    %c0_i32_0 = arith.constant 0 : i32
    %c0_i32_1 = arith.constant 0 : i32
    return %c0_i32, %c0_i32_0 : i32, i32
  }
  func.func @transform_4(%arg0: i32, %arg1: i32) -> (i32, i32) {
    %c0_i32 = arith.constant 0 : i32
    %c0_i32_0 = arith.constant 0 : i32
    %c0_i32_1 = arith.constant 0 : i32
    return %c0_i32, %c0_i32_0 : i32, i32
  }
  func.func @transform_5(%arg0: i32, %arg1: i32) -> (i32, i32) {
    %c0_i32 = arith.constant 0 : i32
    %c0_i32_0 = arith.constant 0 : i32
    %c0_i32_1 = arith.constant 0 : i32
    return %c0_i32, %c0_i32_0 : i32, i32
  }
  func.func @transform_6(%arg0: i32, %arg1: i32) -> (i32, i32) {
    %c0_i32 = arith.constant 0 : i32
    %c0_i32_0 = arith.constant 0 : i32
    %c0_i32_1 = arith.constant 0 : i32
    return %c0_i32, %c0_i32_0 : i32, i32
  }
  func.func @transform_7(%arg0: i32, %arg1: i32) -> (i32, i32, i32) {
    %c0_i32 = arith.constant 0 : i32
    %c0_i32_0 = arith.constant 0 : i32
    return %arg0, %arg1, %c0_i32 : i32, i32, i32
  }
}

</mosaic_0001>

<llo_original>
// kernel: dsconv_forward.1
$region0: #{dsconv_forward.1}
  #allocation0 [shape = 'u32[]', space=smem, size = 0x4, offset = 0x4, fixed_abs, tag = 'smem constant byte address 0x4 - core index']
  #allocation1 [shape = 'u32[72,128]{1,0:T(1,128)}', space=vmem, size = 0x9000, scoped, tag = 'internal scratch']
  #allocation2 [shape = 'f32[10,64]{1,0:T(8,128)}', space=vmem, size = 0x2000, scoped, tag = 'scratch operand']
  %s0 = inlined_call_operand.vmem [shape: bf16[2,16,64], index: 0, kind: input, shape index: {}, may-alias: {0,1,2}]
  %s1 = inlined_call_operand.vmem [shape: bf16[2,16,64], index: 1, kind: input, shape index: {}, may-alias: {0,1,2}]
  %s2 = inlined_call_operand.vmem [shape: bf16[2,16,64], index: 2, kind: input, shape index: {}, may-alias: {0,1,2}]
  %s3 = inlined_call_operand.vmem [shape: f32[9,64], index: 3, kind: input, shape index: {}]
  %s4 = inlined_call_operand.vmem [shape: f32[1,64], index: 4, kind: input, shape index: {}]
  %s5 = inlined_call_operand.vmem [shape: f32[4,128], index: 5, kind: input, shape index: {}]
  %s6 = inlined_call_operand.vmem [shape: f32[1,128], index: 6, kind: input, shape index: {}]
  %s7 = inlined_call_operand.vmem [shape: bf16[2,16,128], index: 7, kind: output, shape index: {}]
  %s8 = sld [smem:[#allocation0]]
  $region61: #{dsconv_forward.1} parent=0
    _
  %s10 = ssub.s32 1, %s8
  %s11 = scalar_select 0, %s10, %s8
  loop: start=0, step=1, limit=6
  $region2: #{dsconv_forward.1} parent=0 // loop_pre_header
    _
  $region3: #{dsconv_forward.1} parent=0 // loop_header
    %s13 = sphi 0, %s17
    %p14 = scmp.ge.s32.totalorder %s13, 6
    %s20 = sphi 0, %s32
    %s21 = sphi 0, %s28
    %s22 = sphi 0, %s20
    %s23 = sphi 0, %s21
    %s24 = sphi 0, %s22
    %s25 = sphi 0, %s23
    %s37 = sphi 0, %s39
    %s40 = sphi 0, %s37
    %s41 = sphi 0, %s40
    %s57 = sphi 0, %s41
    %s71 = sphi 0, %s73
    %s74 = sphi 0, %s71
    %s75 = sphi 0, %s74
    %s91 = sphi 0, %s75
    %s105 = sphi 0, %s107
    %s108 = sphi 0, %s105
    %s109 = sphi 0, %s108
    %s125 = sphi 0, %s109
    %s129 = sphi 0, %s129
    %s131 = sphi 0, %s129
    %s132 = sphi 0, %s131
    %s146 = sphi 0, %s132
    %s150 = sphi 0, %s150
    %s152 = sphi 0, %s150
    %s153 = sphi 0, %s152
    %s167 = sphi 0, %s153
    %s171 = sphi 0, %s171
    %s173 = sphi 0, %s171
    %s174 = sphi 0, %s173
    %s188 = sphi 0, %s174
    %s192 = sphi 0, %s192
    %s194 = sphi 0, %s192
    %s195 = sphi 0, %s194
    %s209 = sphi 0, %s195
    %s217 = sphi 0, %s219
    %s220 = sphi 0, %s217
    %s221 = sphi 0, %s220
    %s237 = sphi 0, %s221
  $region4: #{dsconv_forward.1} parent=0 // loop_header_branch
    %16 = sbr.rel (%p14) target = $region8
  $region5: #{dsconv_forward.1} parent=0 // loop_body
    %s18 = ssub.s32 %s13, 1
    %s19 = ssub.s32 %s13, 2
    %s26 = sadd.s32 1, %s21
    %p27 = scmp.ge.s32.totalorder %s26, 2
    %s28 = scalar_select %p27, 0, %s26
    %s29 = sadd.s32 1, %s20
    %s30 = scalar_select %p27, %s29, %s20
    %p31 = scmp.ge.s32.totalorder %s30, 2
    %s32 = scalar_select %p31, 0, %s30
    %s33 = ssub.s32 %s20, %s32
    %s34 = ssub.s32 %s21, %s28
    %s35 = sor.u32 %s33, %s34
    %p36 = scmp.eq.s32.totalorder %s35, 0
    %s38 = sadd.s32 %s37, 1
    %s39 = scalar_select %p36, %s37, %s38
    %p42 = pneg %p36
    %p43 = scmp.eq.s32.totalorder %s13, 3
    %p44 = por %p42, %p43
    %p45 = scmp.ne.s32.totalorder %s37, %s40
    %p46 = scmp.eq.s32.totalorder %s13, 0
    %p47 = por %p45, %p46
    %p48 = scmp.ne.s32.totalorder %s37, %s40
    %p49 = scmp.eq.s32.totalorder %s18, 3
    %p50 = por %p48, %p49
    %p51 = scmp.ne.s32.totalorder %s40, %s41
    %p52 = scmp.eq.s32.totalorder %s18, 0
    %p53 = por %p51, %p52
    %p54 = scmp.ne.s32.totalorder %s40, %s41
    %p55 = scmp.eq.s32.totalorder %s19, 3
    %p56 = por %p54, %p55
    %p58 = scmp.ne.s32.totalorder %s41, %s57
    %p59 = scmp.eq.s32.totalorder %s19, 0
    %p60 = por %p58, %p59
    %s61 = ssub.s32 %s21, 1
    %p62 = scmp.gt.s32.totalorder %s61, 0
    %s63 = scalar_select %p62, %s61, 0
    %s64 = ssub.s32 %s28, 1
    %p65 = scmp.gt.s32.totalorder %s64, 0
    %s66 = scalar_select %p65, %s64, 0
    %s67 = ssub.s32 %s20, %s32
    %s68 = ssub.s32 %s63, %s66
    %s69 = sor.u32 %s67, %s68
    %p70 = scmp.eq.s32.totalorder %s69, 0
    %s72 = sadd.s32 %s71, 1
    %s73 = scalar_select %p70, %s71, %s72
    %p76 = pneg %p70
    %p77 = scmp.eq.s32.totalorder %s13, 3
    %p78 = por %p76, %p77
    %p79 = scmp.ne.s32.totalorder %s71, %s74
    %p80 = scmp.eq.s32.totalorder %s13, 0
    %p81 = por %p79, %p80
    %p82 = scmp.ne.s32.totalorder %s71, %s74
    %p83 = scmp.eq.s32.totalorder %s18, 3
    %p84 = por %p82, %p83
    %p85 = scmp.ne.s32.totalorder %s74, %s75
    %p86 = scmp.eq.s32.totalorder %s18, 0
    %p87 = por %p85, %p86
    %p88 = scmp.ne.s32.totalorder %s74, %s75
    %p89 = scmp.eq.s32.totalorder %s19, 3
    %p90 = por %p88, %p89
    %p92 = scmp.ne.s32.totalorder %s75, %s91
    %p93 = scmp.eq.s32.totalorder %s19, 0
    %p94 = por %p92, %p93
    %s95 = sadd.s32 %s21, 1
    %p96 = scmp.lt.s32.totalorder %s95, 1
    %s97 = scalar_select %p96, %s95, 1
    %s98 = sadd.s32 %s28, 1
    %p99 = scmp.lt.s32.totalorder %s98, 1
    %s100 = scalar_select %p99, %s98, 1
    %s101 = ssub.s32 %s20, %s32
    %s102 = ssub.s32 %s97, %s100
    %s103 = sor.u32 %s101, %s102
    %p104 = scmp.eq.s32.totalorder %s103, 0
    %s106 = sadd.s32 %s105, 1
    %s107 = scalar_select %p104, %s105, %s106
    %p110 = pneg %p104
    %p111 = scmp.eq.s32.totalorder %s13, 3
    %p112 = por %p110, %p111
    %p113 = scmp.ne.s32.totalorder %s105, %s108
    %p114 = scmp.eq.s32.totalorder %s13, 0
    %p115 = por %p113, %p114
    %p116 = scmp.ne.s32.totalorder %s105, %s108
    %p117 = scmp.eq.s32.totalorder %s18, 3
    %p118 = por %p116, %p117
    %p119 = scmp.ne.s32.totalorder %s108, %s109
    %p120 = scmp.eq.s32.totalorder %s18, 0
    %p121 = por %p119, %p120
    %p122 = scmp.ne.s32.totalorder %s108, %s109
    %p123 = scmp.eq.s32.totalorder %s19, 3
    %p124 = por %p122, %p123
    %p126 = scmp.ne.s32.totalorder %s109, %s125
    %p127 = scmp.eq.s32.totalorder %s19, 0
    %p128 = por %p126, %p127
    %s130 = sadd.s32 %s129, 1
    %p133 = scmp.eq.s32.totalorder %s13, 3
    %p134 = scmp.ne.s32.totalorder %s129, %s131
    %p135 = scmp.eq.s32.totalorder %s13, 0
    %p136 = por %p134, %p135
    %p137 = scmp.ne.s32.totalorder %s129, %s131
    %p138 = scmp.eq.s32.totalorder %s18, 3
    %p139 = por %p137, %p138
    %p140 = scmp.ne.s32.totalorder %s131, %s132
    %p141 = scmp.eq.s32.totalorder %s18, 0
    %p142 = por %p140, %p141
    %p143 = scmp.ne.s32.totalorder %s131, %s132
    %p144 = scmp.eq.s32.totalorder %s19, 3
    %p145 = por %p143, %p144
    %p147 = scmp.ne.s32.totalorder %s132, %s146
    %p148 = scmp.eq.s32.totalorder %s19, 0
    %p149 = por %p147, %p148
    %s151 = sadd.s32 %s150, 1
    %p154 = scmp.eq.s32.totalorder %s13, 3
    %p155 = scmp.ne.s32.totalorder %s150, %s152
    %p156 = scmp.eq.s32.totalorder %s13, 0
    %p157 = por %p155, %p156
    %p158 = scmp.ne.s32.totalorder %s150, %s152
    %p159 = scmp.eq.s32.totalorder %s18, 3
    %p160 = por %p158, %p159
    %p161 = scmp.ne.s32.totalorder %s152, %s153
    %p162 = scmp.eq.s32.totalorder %s18, 0
    %p163 = por %p161, %p162
    %p164 = scmp.ne.s32.totalorder %s152, %s153
    %p165 = scmp.eq.s32.totalorder %s19, 3
    %p166 = por %p164, %p165
    %p168 = scmp.ne.s32.totalorder %s153, %s167
    %p169 = scmp.eq.s32.totalorder %s19, 0
    %p170 = por %p168, %p169
    %s172 = sadd.s32 %s171, 1
    %p175 = scmp.eq.s32.totalorder %s13, 3
    %p176 = scmp.ne.s32.totalorder %s171, %s173
    %p177 = scmp.eq.s32.totalorder %s13, 0
    %p178 = por %p176, %p177
    %p179 = scmp.ne.s32.totalorder %s171, %s173
    %p180 = scmp.eq.s32.totalorder %s18, 3
    %p181 = por %p179, %p180
    %p182 = scmp.ne.s32.totalorder %s173, %s174
    %p183 = scmp.eq.s32.totalorder %s18, 0
    %p184 = por %p182, %p183
    %p185 = scmp.ne.s32.totalorder %s173, %s174
    %p186 = scmp.eq.s32.totalorder %s19, 3
    %p187 = por %p185, %p186
    %p189 = scmp.ne.s32.totalorder %s174, %s188
    %p190 = scmp.eq.s32.totalorder %s19, 0
    %p191 = por %p189, %p190
    %s193 = sadd.s32 %s192, 1
    %p196 = scmp.eq.s32.totalorder %s13, 3
    %p197 = scmp.ne.s32.totalorder %s192, %s194
    %p198 = scmp.eq.s32.totalorder %s13, 0
    %p199 = por %p197, %p198
    %p200 = scmp.ne.s32.totalorder %s192, %s194
    %p201 = scmp.eq.s32.totalorder %s18, 3
    %p202 = por %p200, %p201
    %p203 = scmp.ne.s32.totalorder %s194, %s195
    %p204 = scmp.eq.s32.totalorder %s18, 0
    %p205 = por %p203, %p204
    %p206 = scmp.ne.s32.totalorder %s194, %s195
    %p207 = scmp.eq.s32.totalorder %s19, 3
    %p208 = por %p206, %p207
    %p210 = scmp.ne.s32.totalorder %s195, %s209
    %p211 = scmp.eq.s32.totalorder %s19, 0
    %p212 = por %p210, %p211
    %s213 = ssub.s32 %s20, %s32
    %s214 = ssub.s32 %s21, %s28
    %s215 = sor.u32 %s213, %s214
    %p216 = scmp.eq.s32.totalorder %s215, 0
    %s218 = sadd.s32 %s217, 1
    %s219 = scalar_select %p216, %s217, %s218
    %p222 = pneg %p216
    %p223 = scmp.eq.s32.totalorder %s13, 3
    %p224 = por %p222, %p223
    %p225 = scmp.ne.s32.totalorder %s217, %s220
    %p226 = scmp.eq.s32.totalorder %s13, 0
    %p227 = por %p225, %p226
    %p228 = scmp.ne.s32.totalorder %s217, %s220
    %p229 = scmp.eq.s32.totalorder %s18, 3
    %p230 = por %p228, %p229
    %p231 = scmp.ne.s32.totalorder %s220, %s221
    %p232 = scmp.eq.s32.totalorder %s18, 0
    %p233 = por %p231, %p232
    %p234 = scmp.ne.s32.totalorder %s220, %s221
    %p235 = scmp.eq.s32.totalorder %s19, 3
    %p236 = por %p234, %p235
    %p238 = scmp.ne.s32.totalorder %s221, %s237
    %p239 = scmp.eq.s32.totalorder %s19, 0
    %p240 = por %p238, %p239
    %p241 = scmp.le.s32.totalorder 1, %s13
    %p242 = scmp.lt.s32.totalorder %s13, 5
    %p243 = pnand %p241, %p242
    %p244 = pneg %p243
    // Predicated region
    $region9: #{dsconv_forward.1} parent=5 // pred_check
      _
    $region10: #{dsconv_forward.1} parent=5 // pred_check_branch
      %246 = sbr.rel (%p243) target = $region12
    $region11: #{dsconv_forward.1} parent=5 // pred_region
      %s247 = ssub.s32 %s13, 1
      // Predicated region
      $region13: #{dsconv_forward.1} parent=11 // pred_check
        %p248 = pneg %p142
      $region14: #{dsconv_forward.1} parent=11 // pred_check_branch
        %250 = sbr.rel (%p248) target = $region16
      $region15: #{dsconv_forward.1} parent=11 // pred_region
        _
      $region16: #{dsconv_forward.1} parent=11 // pred_fallthru
        _
      // Predicated region
      $region17: #{dsconv_forward.1} parent=11 // pred_check
        %p251 = pneg %p163
      $region18: #{dsconv_forward.1} parent=11 // pred_check_branch
        %253 = sbr.rel (%p251) target = $region20
      $region19: #{dsconv_forward.1} parent=11 // pred_region
        _
      $region20: #{dsconv_forward.1} parent=11 // pred_fallthru
        _
      // Predicated region
      $region21: #{dsconv_forward.1} parent=11 // pred_check
        %p254 = pneg %p184
      $region22: #{dsconv_forward.1} parent=11 // pred_check_branch
        %256 = sbr.rel (%p254) target = $region24
      $region23: #{dsconv_forward.1} parent=11 // pred_region
        _
      $region24: #{dsconv_forward.1} parent=11 // pred_fallthru
        _
      // Predicated region
      $region25: #{dsconv_forward.1} parent=11 // pred_check
        %p257 = pneg %p205
      $region26: #{dsconv_forward.1} parent=11 // pred_check_branch
        %259 = sbr.rel (%p257) target = $region28
      $region27: #{dsconv_forward.1} parent=11 // pred_region
        _
      $region28: #{dsconv_forward.1} parent=11 // pred_fallthru
        _
    $region12: #{dsconv_forward.1} parent=5 // pred_fallthru
      _
    %p260 = scmp.lt.s32.totalorder %s13, 4
    // Predicated region
    $region29: #{dsconv_forward.1} parent=5 // pred_check
      %p261 = pneg %p260
    $region30: #{dsconv_forward.1} parent=5 // pred_check_branch
      %263 = sbr.rel (%p261) target = $region32
    $region31: #{dsconv_forward.1} parent=5 // pred_region
      // Predicated region
      $region33: #{dsconv_forward.1} parent=31 // pred_check
        %p264 = pneg %p47
      $region34: #{dsconv_forward.1} parent=31 // pred_check_branch
        %266 = sbr.rel (%p264) target = $region36
      $region35: #{dsconv_forward.1} parent=31 // pred_region
        %p267 = scmp.lt.s32.totalorder %s20, 1
        %s268 = scalar_select %p267, %s20, 1
        %p269 = scmp.lt.s32.totalorder %s21, 1
        %s270 = scalar_select %p269, %s21, 1
        %s271 = smul.addr %s268, 2
        %s272 = sadd.s32 %s270, %s271
        %s273 = smul.addr %s272, 4
        %s274 = scalar_lea.vmem %s0, %s273
      $region36: #{dsconv_forward.1} parent=31 // pred_fallthru
        _
      // Predicated region
      $region37: #{dsconv_forward.1} parent=31 // pred_check
        %p275 = pneg %p81
      $region38: #{dsconv_forward.1} parent=31 // pred_check_branch
        %277 = sbr.rel (%p275) target = $region40
      $region39: #{dsconv_forward.1} parent=31 // pred_region
        %s278 = ssub.s32 %s21, 1
        %p279 = scmp.gt.s32.totalorder %s278, 0
        %s280 = scalar_select %p279, %s278, 0
        %p281 = scmp.lt.s32.totalorder %s20, 1
        %s282 = scalar_select %p281, %s20, 1
        %p283 = scmp.lt.s32.totalorder %s280, 1
        %s284 = scalar_select %p283, %s280, 1
        %s285 = smul.addr %s282, 2
        %s286 = sadd.s32 %s284, %s285
        %s287 = smul.addr %s286, 4
        %s288 = scalar_lea.vmem %s1, %s287
        %s289 = ssub.s32 %s21, 1
        %p290 = scmp.gt.s32.totalorder %s289, 0
        %s291 = scalar_select %p290, %s289, 0
      $region40: #{dsconv_forward.1} parent=31 // pred_fallthru
        _
      // Predicated region
      $region41: #{dsconv_forward.1} parent=31 // pred_check
        %p292 = pneg %p115
      $region42: #{dsconv_forward.1} parent=31 // pred_check_branch
        %294 = sbr.rel (%p292) target = $region44
      $region43: #{dsconv_forward.1} parent=31 // pred_region
        %s295 = sadd.s32 %s21, 1
        %p296 = scmp.lt.s32.totalorder %s295, 1
        %s297 = scalar_select %p296, %s295, 1
        %p298 = scmp.lt.s32.totalorder %s20, 1
        %s299 = scalar_select %p298, %s20, 1
        %p300 = scmp.lt.s32.totalorder %s297, 1
        %s301 = scalar_select %p300, %s297, 1
        %s302 = smul.addr %s299, 2
        %s303 = sadd.s32 %s301, %s302
        %s304 = smul.addr %s303, 4
        %s305 = scalar_lea.vmem %s2, %s304
        %s306 = sadd.s32 %s21, 1
        %p307 = scmp.lt.s32.totalorder %s306, 1
        %s308 = scalar_select %p307, %s306, 1
      $region44: #{dsconv_forward.1} parent=31 // pred_fallthru
        _
    $region32: #{dsconv_forward.1} parent=5 // pred_fallthru
      _
    %p309 = scmp.le.s32.totalorder 1, %s13
    %p310 = scmp.lt.s32.totalorder %s13, 5
    %p311 = pnand %p309, %p310
    %p312 = pneg %p311
    // Predicated region
    $region45: #{dsconv_forward.1} parent=5 // pred_check
      _
    $region46: #{dsconv_forward.1} parent=5 // pred_check_branch
      %314 = sbr.rel (%p311) target = $region48
    $region47: #{dsconv_forward.1} parent=5 // pred_region
      %s315 = ssub.s32 %s13, 1
      %p316 = scmp.lt.s32.totalorder %s22, 1
      %s317 = scalar_select %p316, %s22, 1
      %p318 = scmp.lt.s32.totalorder %s23, 1
      %s319 = scalar_select %p318, %s23, 1
      %s320 = smul.addr %s317, 2
      %s321 = sadd.s32 %s319, %s320
      %s322 = smul.addr %s321, 4
      %s323 = scalar_lea.vmem %s0, %s322
      %p324 = pneg %p53
      %p325 = pneg %p50
      %s326 = ssub.s32 %s23, 1
      %p327 = scmp.gt.s32.totalorder %s326, 0
      %s328 = scalar_select %p327, %s326, 0
      %p329 = scmp.lt.s32.totalorder %s22, 1
      %s330 = scalar_select %p329, %s22, 1
      %p331 = scmp.lt.s32.totalorder %s328, 1
      %s332 = scalar_select %p331, %s328, 1
      %s333 = smul.addr %s330, 2
      %s334 = sadd.s32 %s332, %s333
      %s335 = smul.addr %s334, 4
      %s336 = scalar_lea.vmem %s1, %s335
      %p337 = pneg %p87
      %p338 = pneg %p84
      %s339 = sadd.s32 %s23, 1
      %p340 = scmp.lt.s32.totalorder %s339, 1
      %s341 = scalar_select %p340, %s339, 1
      %p342 = scmp.lt.s32.totalorder %s22, 1
      %s343 = scalar_select %p342, %s22, 1
      %p344 = scmp.lt.s32.totalorder %s341, 1
      %s345 = scalar_select %p344, %s341, 1
      %s346 = smul.addr %s343, 2
      %s347 = sadd.s32 %s345, %s346
      %s348 = smul.addr %s347, 4
      %s349 = scalar_lea.vmem %s2, %s348
      %p350 = pneg %p121
      %p351 = pneg %p118
      %p352 = pneg %p142
      %p353 = pneg %p139
      %p354 = pneg %p163
      %p355 = pneg %p160
      %p356 = pneg %p184
      %p357 = pneg %p181
      %p358 = pneg %p205
      %p359 = pneg %p202
      %p360 = pneg %p233
      %p361 = pneg %p230
      %p362 = scmp.lt.s32.totalorder %s22, 1
      %s363 = scalar_select %p362, %s22, 1
      %p364 = scmp.lt.s32.totalorder %s23, 1
      %s365 = scalar_select %p364, %s23, 1
      %s366 = smul.addr %s363, 2
      %s367 = sadd.s32 %s365, %s366
      %s368 = smul.addr %s367, 4
      %s369 = scalar_lea.vmem %s7, %s368
      %p370 = scmp.lt.s32.totalorder %s22, 1
      %s371 = scalar_select %p370, %s22, 1
      %p372 = scmp.lt.s32.totalorder %s23, 1
      %s373 = scalar_select %p372, %s23, 1
      %s374 = smul.addr %s371, 2
      %s375 = sadd.s32 %s373, %s374
      %s376 = smul.addr %s375, 4
      %s377 = scalar_lea.vmem %s0, %s376
      %s378 = ssub.s32 %s23, 1
      %p379 = scmp.gt.s32.totalorder %s378, 0
      %s380 = scalar_select %p379, %s378, 0
      %p381 = scmp.lt.s32.totalorder %s22, 1
      %s382 = scalar_select %p381, %s22, 1
      %p383 = scmp.lt.s32.totalorder %s380, 1
      %s384 = scalar_select %p383, %s380, 1
      %s385 = smul.addr %s382, 2
      %s386 = sadd.s32 %s384, %s385
      %s387 = smul.addr %s386, 4
      %s388 = scalar_lea.vmem %s1, %s387
      %s389 = ssub.s32 %s23, 1
      %p390 = scmp.gt.s32.totalorder %s389, 0
      %s391 = scalar_select %p390, %s389, 0
      %s392 = sadd.s32 %s23, 1
      %p393 = scmp.lt.s32.totalorder %s392, 1
      %s394 = scalar_select %p393, %s392, 1
      %p395 = scmp.lt.s32.totalorder %s22, 1
      %s396 = scalar_select %p395, %s22, 1
      %p397 = scmp.lt.s32.totalorder %s394, 1
      %s398 = scalar_select %p397, %s394, 1
      %s399 = smul.addr %s396, 2
      %s400 = sadd.s32 %s398, %s399
      %s401 = smul.addr %s400, 4
      %s402 = scalar_lea.vmem %s2, %s401
      %s403 = sadd.s32 %s23, 1
      %p404 = scmp.lt.s32.totalorder %s403, 1
      %s405 = scalar_select %p404, %s403, 1
      %p406 = scmp.lt.s32.totalorder %s22, 1
      %s407 = scalar_select %p406, %s22, 1
      %p408 = scmp.lt.s32.totalorder %s23, 1
      %s409 = scalar_select %p408, %s23, 1
      %s410 = smul.addr %s407, 2
      %s411 = sadd.s32 %s409, %s410
      %s412 = smul.addr %s411, 4
      %s413 = scalar_lea.vmem %s7, %s412
      %p414 = scmp.gt.s32.totalorder %s23, 0
      %s415 = scalar_select %p414, 1, 0
      %s416 = scvt.s32.f32 %s415
      %p417 = scmp.lt.s32.totalorder %s23, 1
      %s418 = scalar_select %p417, 1, 0
      %s419 = scvt.s32.f32 %s418
      %v420 = vld [vmem:[%s377] sm:$0xf]
      %v421 = vunpack.c.l.bf16 %v420
      %vm422 = vcmask 523264
      %423 = vst.msk [vmem:[#allocation2 + $0x1] sm:$0xff] %vm422, %v421
      %v424 = vld [vmem:[%s388] sm:$0x8]
      %v425 = vunpack.c.l.bf16 %v424
      %v426 = vstv %s416
      %v427 = vmul.f32 %v425, %v426
      %vm428 = vcmask 523271
      %429 = vst.msk [vmem:[#allocation2 - $0x7] sm:$0x80] %vm428, %v427
      %v430 = vld [vmem:[%s402] sm:$0x1]
      %v431 = vunpack.c.l.bf16 %v430
      %v432 = vstv %s419
      %v433 = vmul.f32 %v431, %v432
      %vm434 = vcmask 516096
      %435 = vst.msk [vmem:[#allocation2 + $0x9] sm:$0x1] %vm434, %v433
      %v436 = vld [vmem:[#allocation2] sm:$0xff]
      %v437 = vld [vmem:[#allocation2 + $0x8] sm:$0x3]
      %v438 = vlaneseq
      %v439 = vand.u32 %v438, 127
      %vm440 = vcmp.lt.s32.totalorder %v439, 0
      %v441 = vsub.s32 0, %v439
      %v442 = vsel %vm440, %v441, %v439
      %v443 = vshrl.u32 %v442, 4
      %v444 = vand.u32 %v442, 15
      %v445 = vsub.s32 0, %v444
      %v446 = vsel %vm440, %v445, %v444
      %vm447 = vcmp.ne.s32.totalorder %v446, 0
      %vm448 = vcmp.lt.s32.totalorder %v446, 0
      %vm449 = vmand %vm448, %vm447
      %v450 = vadd.s32 %v446, 16
      %v451 = vsel %vm449, %v450, %v446
      %454 = vrot.lane.b32.xlu0 %v436, 1
      %v455 = vpop.permute.xlu0 %454
      %456 = vrot.lane.b32.xlu0 %v437, 1
      %v457 = vpop.permute.xlu0 %456
      %vm460 = vcmask 7168
      %v461 = vsel %vm460, 0.0, %v455
      %v462 = vsel %vm460, 0.0, %v457
      %vm463 = vcmp.eq.s32.totalorder %v451, 0
      %v464 = vsel %vm463, 0.0, %v461
      %v465 = vsel %vm463, 0.0, %v462
      %466 = vrot.lane.b32.xlu0 %v436, 127
      %v467 = vpop.permute.xlu0 %466
      %468 = vrot.lane.b32.xlu0 %v437, 127
      %v469 = vpop.permute.xlu0 %468
      %vm472 = vcmask 515072
      %v473 = vsel %vm472, %v467, 0.0
      %v474 = vsel %vm472, %v469, 0.0
      %vm475 = vcmp.eq.s32.totalorder %v451, 15
      %v476 = vsel %vm475, 0.0, %v473
      %v477 = vsel %vm475, 0.0, %v474
      %v478 = vld [vmem:[%s3] sm:$0xff]
      %v479 = vld [vmem:[%s3 + $0x8] sm:$0x1]
      %v480 = vperm.slane %v478, 0
      %v481 = vmul.f32 %v464, %v480
      %v482 = vadd.f32 %v481, 0.0
      %v483 = vperm.slane %v478, 1
      %v484 = vmul.f32 %v436, %v483
      %v485 = vadd.f32 %v482, %v484
      %v486 = vperm.slane %v478, 2
      %v487 = vmul.f32 %v476, %v486
      %v488 = vadd.f32 %v485, %v487
      %v489 = vperm.slane %v478, 3
      %v490 = vmul.f32 %v464, %v489
      %v491 = vmul.f32 %v465, %v489
      %vm494 = vcmask 1046528
      %v495 = vrot.slane %v490, 1
      %v496 = vrot.slane %v491, 1
      %v497 = vsel %vm494, %v495, %v496
      %v499 = vadd.f32 %v488, %v497
      %v500 = vperm.slane %v478, 4
      %v501 = vmul.f32 %v436, %v500
      %v502 = vmul.f32 %v437, %v500
      %v505 = vrot.slane %v501, 1
      %v506 = vrot.slane %v502, 1
      %v507 = vsel %vm494, %v505, %v506
      %v509 = vadd.f32 %v499, %v507
      %v510 = vperm.slane %v478, 5
      %v511 = vmul.f32 %v476, %v510
      %v512 = vmul.f32 %v477, %v510
      %v515 = vrot.slane %v511, 1
      %v516 = vrot.slane %v512, 1
      %v517 = vsel %vm494, %v515, %v516
      %v519 = vadd.f32 %v509, %v517
      %v520 = vperm.slane %v478, 6
      %v521 = vmul.f32 %v464, %v520
      %v522 = vmul.f32 %v465, %v520
      %vm525 = vcmask 1045504
      %v526 = vrot.slane %v521, 2
      %v527 = vrot.slane %v522, 2
      %v528 = vsel %vm525, %v526, %v527
      %v530 = vadd.f32 %v519, %v528
      %v531 = vperm.slane %v478, 7
      %v532 = vmul.f32 %v436, %v531
      %v533 = vmul.f32 %v437, %v531
      %v536 = vrot.slane %v532, 2
      %v537 = vrot.slane %v533, 2
      %v538 = vsel %vm525, %v536, %v537
      %v540 = vadd.f32 %v530, %v538
      %v541 = vperm.slane %v479, 0
      %v542 = vmul.f32 %v476, %v541
      %v543 = vmul.f32 %v477, %v541
      %v546 = vrot.slane %v542, 2
      %v547 = vrot.slane %v543, 2
      %v548 = vsel %vm525, %v546, %v547
      %v550 = vadd.f32 %v540, %v548
      %v551 = vld [vmem:[%s4] sm:$0x1]
      %v553 = vperm.slane %v551, 0
      %v555 = vadd.f32 %v550, %v553
      %v556 = vmax.f32 %v555, 0.0
      %v557 = vmin.f32 %v556, 6.0
      %v558 = vld [vmem:[%s5] sm:$0xf]
      %v559 = vld [vmem:[%s6] sm:$0x1]
      %v561 = vperm.slane %v559, 0
      %v563 = vadd.f32 %v561, 0.0
      %565 = vrot.lane.b32.xlu0 %v557, 16
      %v566 = vpop.permute.xlu0 %565
      %568 = vrot.lane.b32.xlu0 %v557, 32
      %v569 = vpop.permute.xlu0 %568
      %571 = vrot.lane.b32.xlu0 %v557, 48
      %v572 = vpop.permute.xlu0 %571
      %574 = vrot.lane.b32.xlu0 %v557, 64
      %v575 = vpop.permute.xlu0 %574
      %577 = vrot.lane.b32.xlu0 %v557, 80
      %v578 = vpop.permute.xlu0 %577
      %580 = vrot.lane.b32.xlu0 %v557, 96
      %v581 = vpop.permute.xlu0 %580
      %583 = vrot.lane.b32.xlu0 %v557, 112
      %v584 = vpop.permute.xlu0 %583
      %vm586 = vcmask 130048
      %v587 = vsel %vm586, %v557, %v566
      %vm588 = vcmask 261120
      %v589 = vsel %vm588, %v587, %v569
      %vm590 = vcmask 392192
      %v591 = vsel %vm590, %v589, %v572
      %v592 = vsel %vm422, %v591, %v575
      %vm593 = vcmask 654336
      %v594 = vsel %vm593, %v592, %v578
      %vm595 = vcmask 785408
      %v596 = vsel %vm595, %v594, %v581
      %vm597 = vcmask 916480
      %v598 = vsel %vm597, %v596, %v584
      %v599 = vperm.slane %v558, 0
      %v600 = vmul.f32 %v598, %v599
      %v601 = vadd.f32 %v563, %v600
      %v602 = vsel %vm586, %v584, %v557
      %v603 = vsel %vm588, %v602, %v566
      %v604 = vsel %vm590, %v603, %v569
      %v605 = vsel %vm422, %v604, %v572
      %v606 = vsel %vm593, %v605, %v575
      %v607 = vsel %vm595, %v606, %v578
      %v608 = vsel %vm597, %v607, %v581
      %v609 = vperm.slane %v558, 1
      %v610 = vmul.f32 %v608, %v609
      %v611 = vadd.f32 %v601, %v610
      %v612 = vsel %vm586, %v581, %v584
      %v613 = vsel %vm588, %v612, %v557
      %v614 = vsel %vm590, %v613, %v566
      %v615 = vsel %vm422, %v614, %v569
      %v616 = vsel %vm593, %v615, %v572
      %v617 = vsel %vm595, %v616, %v575
      %v618 = vsel %vm597, %v617, %v578
      %v619 = vperm.slane %v558, 2
      %v620 = vmul.f32 %v618, %v619
      %v621 = vadd.f32 %v611, %v620
      %v622 = vsel %vm586, %v578, %v581
      %v623 = vsel %vm588, %v622, %v584
      %v624 = vsel %vm590, %v623, %v557
      %v625 = vsel %vm422, %v624, %v566
      %v626 = vsel %vm593, %v625, %v569
      %v627 = vsel %vm595, %v626, %v572
      %v628 = vsel %vm597, %v627, %v575
      %v629 = vperm.slane %v558, 3
      %v630 = vmul.f32 %v628, %v629
      %v631 = vadd.f32 %v621, %v630
      %v632 = vpack.c.bf16 %v631, %v631
      %633 = vst [vmem:[%s413] sm:$0xf] %v632
      %p634 = scmp.lt.s32.totalorder %s22, 1
      %s635 = scalar_select %p634, %s22, 1
      %p636 = scmp.lt.s32.totalorder %s23, 1
      %s637 = scalar_select %p636, %s23, 1
      %s638 = smul.addr %s635, 2
      %s639 = sadd.s32 %s637, %s638
      %s640 = smul.addr %s639, 4
      %s641 = scalar_lea.vmem %s7, %s640
      // Predicated region
      $region49: #{dsconv_forward.1} parent=47 // pred_check
        %p642 = pneg %p230
      $region50: #{dsconv_forward.1} parent=47 // pred_check_branch
        %644 = sbr.rel (%p642) target = $region52
      $region51: #{dsconv_forward.1} parent=47 // pred_region
        _
      $region52: #{dsconv_forward.1} parent=47 // pred_fallthru
        _
    $region48: #{dsconv_forward.1} parent=5 // pred_fallthru
      _
    %p645 = scmp.le.s32.totalorder 2, %s13
    // Predicated region
    $region53: #{dsconv_forward.1} parent=5 // pred_check
      %p646 = pneg %p645
    $region54: #{dsconv_forward.1} parent=5 // pred_check_branch
      %648 = sbr.rel (%p646) target = $region56
    $region55: #{dsconv_forward.1} parent=5 // pred_region
      %s649 = ssub.s32 %s13, 2
      // Predicated region
      $region57: #{dsconv_forward.1} parent=55 // pred_check
        %p650 = pneg %p236
      $region58: #{dsconv_forward.1} parent=55 // pred_check_branch
        %652 = sbr.rel (%p650) target = $region60
      $region59: #{dsconv_forward.1} parent=55 // pred_region
        %p653 = scmp.lt.s32.totalorder %s24, 1
        %s654 = scalar_select %p653, %s24, 1
        %p655 = scmp.lt.s32.totalorder %s25, 1
        %s656 = scalar_select %p655, %s25, 1
        %s657 = smul.addr %s654, 2
        %s658 = sadd.s32 %s656, %s657
        %s659 = smul.addr %s658, 4
        %s660 = scalar_lea.vmem %s7, %s659
      $region60: #{dsconv_forward.1} parent=55 // pred_fallthru
        _
    $region56: #{dsconv_forward.1} parent=5 // pred_fallthru
      _
  $region6: #{dsconv_forward.1} parent=0 // loop_footer
    %s17 = sadd.s32 1, %s13
  $region7: #{dsconv_forward.1} parent=0 // loop_footer_branch
    %12 = sbr.rel target = $region3
  $region8: #{dsconv_forward.1} parent=0 // loop_exit
    _

</llo_original>
